<compile_context>
chip_gen: v5e
topology: v5e:2x2
jax: 0.10.0
libtpu: 0.0.40
codegen_flags: <defaults>
</compile_context>

<pallas_src>
import jax
import jax.numpy as jnp
from jax.experimental import pallas as pl
from jax.experimental.pallas import tpu as pltpu

_LANES = 128
_MAX_TILE_ROWS = 4096          # (4096, 128) f32 block = 2 MiB


def _make_kernel(tile_rows, rows_valid, need_mask):
    def kernel(x_ref, y_ref, sum_ref, cnt_ref, acc_sum, acc_cnt):
        i = pl.program_id(0)

        @pl.when(i == 0)
        def _():
            acc_sum[...] = jnp.zeros_like(acc_sum)
            acc_cnt[...] = jnp.zeros_like(acc_cnt)

        x = x_ref[...].astype(jnp.float32)
        y = y_ref[...].astype(jnp.float32)

        nz = y != 0.0
        if need_mask:
            # Ragged tail block: rows at/after `rows_valid` hold undefined data.
            row_ids = jax.lax.broadcasted_iota(jnp.int32, (tile_rows, _LANES), 0)
            nz = jnp.logical_and(nz, row_ids + i * tile_rows < rows_valid)

        d = x - y
        sq = jnp.where(nz, d * d, jnp.float32(0.0))
        cnt = nz.astype(jnp.int32)

        # Leading-axis reduce -> pure VPU adds into one-vreg accumulators.
        acc_sum[...] += jnp.sum(sq.reshape(-1, 8, _LANES), axis=0)
        acc_cnt[...] += jnp.sum(cnt.reshape(-1, 8, _LANES), axis=0)

        @pl.when(i == pl.num_programs(0) - 1)
        def _():
            sum_ref[0] = jnp.sum(acc_sum[...])
            cnt_ref[0] = jnp.sum(acc_cnt[...])

    return kernel


def fmse_loss(x, y):
    """Pallas TPU implementation of FMSELoss.forward(x, y)."""
    assert x.shape == y.shape, "x and y must have the same shape"

    n = x.size
    xf = x.reshape(-1)          # reshape of contiguous data (no HBM copy)
    yf = y.reshape(-1)

    rows = pl.cdiv(n, _LANES)
    if rows <= _MAX_TILE_ROWS:
        # Single block covering the whole array; round rows up to a sublane
        # multiple so the in-kernel (.., 8, 128) accumulation reshape is legal.
        tile_rows = max(8, pl.cdiv(rows, 8) * 8)
        rows_padded = tile_rows
    else:
        tile_rows = _MAX_TILE_ROWS
        rows_padded = rows      # ragged tail block handled by in-kernel mask

    padded_n = rows_padded * _LANES
    pad = padded_n - n
    if pad:
        # Rare path (n not a multiple of 128, or tiny inputs).  Zero padding is
        # correct because padded y entries are 0 and hence excluded.
        # TODO(synk): a manual-DMA tail path could avoid this HBM copy entirely.
        xf = jnp.pad(xf, (0, pad))
        yf = jnp.pad(yf, (0, pad))

    x2 = xf.reshape(rows_padded, _LANES)
    y2 = yf.reshape(rows_padded, _LANES)

    grid_steps = pl.cdiv(rows_padded, tile_rows)
    need_mask = (grid_steps * tile_rows) != rows_padded

    tile_spec = pl.BlockSpec((tile_rows, _LANES), lambda i: (i, 0))
    scalar_out_spec = pl.BlockSpec(memory_space=pltpu.SMEM)

    total, count = pl.pallas_call(
        _make_kernel(tile_rows, rows_padded, need_mask),
        out_shape=(
            jax.ShapeDtypeStruct((1,), jnp.float32),
            jax.ShapeDtypeStruct((1,), jnp.int32),
        ),
        grid_spec=pltpu.PrefetchScalarGridSpec(
            num_scalar_prefetch=0,
            grid=(grid_steps,),
            in_specs=[tile_spec, tile_spec],
            out_specs=(scalar_out_spec, scalar_out_spec),
            scratch_shapes=[
                pltpu.VMEM((8, _LANES), jnp.float32),
                pltpu.VMEM((8, _LANES), jnp.int32),
            ],
        ),
        compiler_params=pltpu.CompilerParams(
            # Shared accumulator => serial grid.
            # TODO(synk): a 2-D (parallel, arbitrary) grid with per-core partial
            # sums would engage both TensorCores on v7x.
            dimension_semantics=("arbitrary",),
        ),
    )(x2, y2)

    # torch.sum(l_nonzero) / idx_nonzero.shape[0]  (count==0 -> inf/nan, as torch)
    return total[0] / count[0].astype(jnp.float32)


def _fmse_ref(x, y):
    xf = x.astype(jnp.float32)
    yf = y.astype(jnp.float32)
    l = (xf - yf) ** 2
    l_nz = jnp.where(yf != 0, l, yf)
    return jnp.sum(l_nz) / jnp.sum(yf != 0).astype(jnp.float32)


if __name__ == "__main__":
    key = jax.random.PRNGKey(0)
    kx, ky, km = jax.random.split(key, 3)

    shape = (2, 4, 16, 16)          # NCHW, as in the PyTorch module's usage
    x = jax.random.normal(kx, shape, dtype=jnp.float32)
    y = jax.random.normal(ky, shape, dtype=jnp.float32)
    # Make ~30% of y exactly zero so the nonzero-masking path is exercised.
    zero_mask = jax.random.uniform(km, shape) < 0.3
    y = jnp.where(zero_mask, 0.0, y)

    out = jax.block_until_ready(fmse_loss(x, y))
    ref = _fmse_ref(x, y)
    assert jnp.allclose(out, ref, rtol=1e-5, atol=1e-5), (out, ref)

    # Native-dtype path: bf16 inputs are read as bf16 (half the HBM traffic)
    # and upcast to f32 inside the kernel.
    xb = x.astype(jnp.bfloat16)
    yb = y.astype(jnp.bfloat16)
    out_b = jax.block_until_ready(fmse_loss(xb, yb))
    ref_b = _fmse_ref(xb, yb)
    assert jnp.allclose(out_b, ref_b, rtol=1e-3, atol=1e-3), (out_b, ref_b)

    print("KERNEL_OK")
</pallas_src>

<mosaic_0001>
module attributes {stable_mosaic.version = 11 : i64} {
  func.func @kernel(%arg0: i32, %arg1: memref<16x128xf32, #tpu.memory_space<vmem>>, %arg2: memref<16x128xf32, #tpu.memory_space<vmem>>, %arg3: memref<1xf32, #tpu.memory_space<smem>>, %arg4: memref<1xi32, #tpu.memory_space<smem>>, %arg5: memref<8x128xf32, #tpu.memory_space<vmem>>, %arg6: memref<8x128xi32, #tpu.memory_space<vmem>>) attributes {dimension_semantics = [#tpu.dimension_semantics<arbitrary>], iteration_bounds = array<i64: 1>, scalar_prefetch = 0 : i64, scratch_operands = 2 : i64, tpu.core_type = #tpu.core_type<tc>, window_params = [{transform_indices = @transform_0, window_bounds = array<i64: 16, 128>}, {transform_indices = @transform_1, window_bounds = array<i64: 16, 128>}, {transform_indices = @transform_2, window_bounds = array<i64: 1>}, {transform_indices = @transform_3, window_bounds = array<i64: 1>}]} {
    %c0_i32 = arith.constant 0 : i32
    %0 = arith.cmpi eq, %arg0, %c0_i32 : i32
    %1 = arith.extui %0 : i1 to i32
    %c0_i32_0 = arith.constant 0 : i32
    %2 = arith.cmpi ne, %1, %c0_i32_0 : i32
    scf.if %2 {
      %cst_17 = arith.constant 0.000000e+00 : f32
      %25 = vector.broadcast %cst_17 : f32 to vector<8x128xf32>
      %c0_18 = arith.constant 0 : index
      %c0_19 = arith.constant 0 : index
      %26 = vector.load %arg5[%c0_18, %c0_19] : memref<8x128xf32, #tpu.memory_space<vmem>>, vector<8x128xf32>
      tpu.vector_store %arg5[%c0_18, %c0_19], %25 {strides = array<i32>} : memref<8x128xf32, #tpu.memory_space<vmem>>, vector<8x128xf32>,
      %c0_i32_20 = arith.constant 0 : i32
      %27 = vector.broadcast %c0_i32_20 : i32 to vector<8x128xi32>
      %c0_21 = arith.constant 0 : index
      %c0_22 = arith.constant 0 : index
      %28 = vector.load %arg6[%c0_21, %c0_22] : memref<8x128xi32, #tpu.memory_space<vmem>>, vector<8x128xi32>
      tpu.vector_store %arg6[%c0_21, %c0_22], %27 {strides = array<i32>} : memref<8x128xi32, #tpu.memory_space<vmem>>, vector<8x128xi32>,
    } else {
    }
    %c0 = arith.constant 0 : index
    %c0_1 = arith.constant 0 : index
    %3 = vector.load %arg1[%c0, %c0_1] : memref<16x128xf32, #tpu.memory_space<vmem>>, vector<16x128xf32>
    %c0_2 = arith.constant 0 : index
    %c0_3 = arith.constant 0 : index
    %4 = vector.load %arg2[%c0_2, %c0_3] : memref<16x128xf32, #tpu.memory_space<vmem>>, vector<16x128xf32>
    %cst = arith.constant 0.000000e+00 : f32
    %5 = vector.broadcast %cst : f32 to vector<16x128xf32>
    %6 = arith.cmpf one, %4, %5 : vector<16x128xf32>
    %7 = arith.subf %3, %4 : vector<16x128xf32>
    %8 = arith.mulf %7, %7 : vector<16x128xf32>
    %cst_4 = arith.constant 0.000000e+00 : f32
    %9 = vector.broadcast %cst_4 : f32 to vector<16x128xf32>
    %10 = arith.select %6, %8, %9 : vector<16x128xi1>, vector<16x128xf32>
    %11 = arith.extui %6 : vector<16x128xi1> to vector<16x128xi32>
    %c0_5 = arith.constant 0 : index
    %c0_6 = arith.constant 0 : index
    %12 = vector.load %arg5[%c0_5, %c0_6] : memref<8x128xf32, #tpu.memory_space<vmem>>, vector<8x128xf32>
    %13 = vector.shape_cast %10 : vector<16x128xf32> to vector<2x8x128xf32>
    %cst_7 = arith.constant dense<0.000000e+00> : vector<8x128xf32>
    %14 = vector.multi_reduction <add>, %13, %cst_7 [0] : vector<2x8x128xf32> to vector<8x128xf32>
    %15 = arith.addf %12, %14 : vector<8x128xf32>
    %c0_8 = arith.constant 0 : index
    %c0_9 = arith.constant 0 : index
    %16 = vector.load %arg5[%c0_8, %c0_9] : memref<8x128xf32, #tpu.memory_space<vmem>>, vector<8x128xf32>
    tpu.vector_store %arg5[%c0_8, %c0_9], %15 {strides = array<i32>} : memref<8x128xf32, #tpu.memory_space<vmem>>, vector<8x128xf32>,
    %c0_10 = arith.constant 0 : index
    %c0_11 = arith.constant 0 : index
    %17 = vector.load %arg6[%c0_10, %c0_11] : memref<8x128xi32, #tpu.memory_space<vmem>>, vector<8x128xi32>
    %18 = vector.shape_cast %11 : vector<16x128xi32> to vector<2x8x128xi32>
    %cst_12 = arith.constant dense<0> : vector<8x128xi32>
    %19 = vector.multi_reduction <add>, %18, %cst_12 [0] : vector<2x8x128xi32> to vector<8x128xi32>
    %20 = arith.addi %17, %19 : vector<8x128xi32>
    %c0_13 = arith.constant 0 : index
    %c0_14 = arith.constant 0 : index
    %21 = vector.load %arg6[%c0_13, %c0_14] : memref<8x128xi32, #tpu.memory_space<vmem>>, vector<8x128xi32>
    tpu.vector_store %arg6[%c0_13, %c0_14], %20 {strides = array<i32>} : memref<8x128xi32, #tpu.memory_space<vmem>>, vector<8x128xi32>,
    %c0_i32_15 = arith.constant 0 : i32
    %22 = arith.cmpi eq, %arg0, %c0_i32_15 : i32
    %23 = arith.extui %22 : i1 to i32
    %c0_i32_16 = arith.constant 0 : i32
    %24 = arith.cmpi ne, %23, %c0_i32_16 : i32
    scf.if %24 {
      %c0_17 = arith.constant 0 : index
      %c0_18 = arith.constant 0 : index
      %25 = vector.load %arg5[%c0_17, %c0_18] : memref<8x128xf32, #tpu.memory_space<vmem>>, vector<8x128xf32>
      %26 = vector.shape_cast %25 : vector<8x128xf32> to vector<1x8x128xf32>
      %cst_19 = arith.constant dense<0.000000e+00> : vector<1xf32>
      %27 = vector.multi_reduction <add>, %26, %cst_19 [1, 2] : vector<1x8x128xf32> to vector<1xf32>
      %28 = vector.shape_cast %27 : vector<1xf32> to vector<1x1x1xf32>
      %29 = vector.extract %28[0, 0, 0] : f32 from vector<1x1x1xf32>
      %c0_20 = arith.constant 0 : index
      %30 = memref.load %arg3[%c0_20] : memref<1xf32, #tpu.memory_space<smem>>
      memref.store %29, %arg3[%c0_20] : memref<1xf32, #tpu.memory_space<smem>>
      %c0_21 = arith.constant 0 : index
      %c0_22 = arith.constant 0 : index
      %31 = vector.load %arg6[%c0_21, %c0_22] : memref<8x128xi32, #tpu.memory_space<vmem>>, vector<8x128xi32>
      %32 = vector.shape_cast %31 : vector<8x128xi32> to vector<1x8x128xi32>
      %cst_23 = arith.constant dense<0> : vector<1xi32>
      %33 = vector.multi_reduction <add>, %32, %cst_23 [1, 2] : vector<1x8x128xi32> to vector<1xi32>
      %34 = vector.shape_cast %33 : vector<1xi32> to vector<1x1x1xi32>
      %35 = vector.extract %34[0, 0, 0] : i32 from vector<1x1x1xi32>
      %c0_24 = arith.constant 0 : index
      %36 = memref.load %arg4[%c0_24] : memref<1xi32, #tpu.memory_space<smem>>
      memref.store %35, %arg4[%c0_24] : memref<1xi32, #tpu.memory_space<smem>>
    } else {
    }
    return
  }
  func.func @transform_0(%arg0: i32) -> (i32, i32) {
    %c0_i32 = arith.constant 0 : i32
    %c0_i32_0 = arith.constant 0 : i32
    return %arg0, %c0_i32 : i32, i32
  }
  func.func @transform_1(%arg0: i32) -> (i32, i32) {
    %c0_i32 = arith.constant 0 : i32
    %c0_i32_0 = arith.constant 0 : i32
    return %arg0, %c0_i32 : i32, i32
  }
  func.func @transform_2(%arg0: i32) -> i32 {
    %c0_i32 = arith.constant 0 : i32
    %c0_i32_0 = arith.constant 0 : i32
    return %c0_i32 : i32
  }
  func.func @transform_3(%arg0: i32) -> i32 {
    %c0_i32 = arith.constant 0 : i32
    %c0_i32_0 = arith.constant 0 : i32
    return %c0_i32 : i32
  }
}

</mosaic_0001>

<llo_original>
// kernel: tpu_custom_call.1
$region0: #{tpu_custom_call.1}
  #allocation0 [shape = 'u32[]', space=smem, size = 0x4, offset = 0x4, fixed_abs, tag = 'smem constant byte address 0x4 - core index']
  #allocation1 [shape = 'u32[72,128]{1,0:T(1,128)}', space=vmem, size = 0x9000, scoped, tag = 'internal scratch']
  #allocation2 [shape = 'f32[8,128]{1,0:T(8,128)}', space=vmem, size = 0x1000, scoped, tag = 'scratch operand']
  #allocation3 [shape = 's32[8,128]{1,0:T(8,128)}', space=vmem, size = 0x1000, scoped, tag = 'scratch operand']
  %s0 = inlined_call_operand.hbm [shape: f32[16,128], index: 0, kind: input, shape index: {}]
  %s1 = inlined_call_operand.hbm [shape: f32[16,128], index: 1, kind: input, shape index: {}]
  %s2 = inlined_call_operand.hbm [shape: f32[1], index: 2, kind: output, shape index: {0}]
  %s3 = inlined_call_operand.hbm [shape: s32[1], index: 3, kind: output, shape index: {1}]
  %4 = xla_tuple %s2, %s3
  %s5 = sld [smem:[#allocation0]]
  $region42: #{tpu_custom_call.1} parent=0
    _
  %s7 = ssub.s32 1, %s5
  %s8 = scalar_select 0, %s7, %s5
  $region1: #{tpu_custom_call.1} parent=0
    #allocation4 [shape = 'u8[8192]{0}', space=vmem, size = 0x2000, scoped, tag = 'input window, operand 0, single buffered']
    #allocation5 [shape = 's32[1]{0}', space=sflag, size = 0x4, scoped, tag = 'scoped memory for tpu_custom_call.1']
    #allocation6 [shape = 's32[1]{0}', space=sflag, size = 0x4, scoped, tag = 'scoped memory for tpu_custom_call.1']
    #allocation7 [shape = 'u8[8192]{0}', space=vmem, size = 0x2000, scoped, tag = 'input window, operand 1, single buffered']
    #allocation8 [shape = 's32[1]{0}', space=sflag, size = 0x4, scoped, tag = 'scoped memory for tpu_custom_call.1']
    #allocation9 [shape = 'u8[512]{0}', space=smem, size = 0x200, scoped, tag = 'output window, operand 0, single buffered']
    #allocation10 [shape = 'u8[512]{0}', space=smem, size = 0x200, scoped, tag = 'output window, operand 1, single buffered']
    #allocation11 [shape = 's32[1]{0}', space=sflag, size = 0x4, scoped, tag = 'scoped memory for tpu_custom_call.1']
    %9 = vsyncpa [#allocation5], 0
    %10 = vsyncpa [#allocation8], 0
    %11 = vsyncpa [#allocation6], 0
    %12 = vsyncpa [#allocation11], 0
    // Predicated region
    $region2: #{tpu_custom_call.1} parent=1 // pred_check
      _
    $region3: #{tpu_custom_call.1} parent=1 // pred_check_branch
      %14 = sbr.rel (0) target = $region5
    $region4: #{tpu_custom_call.1} parent=1 // pred_region
      %16 = vsyncadd [#allocation5], 0
      %s17 = sshll.u32 %s0, 4
      %s18 = int_to_ptr.hbm [resolvable:$true] %s17
      %s19 = sshll.u32 [#allocation4], 4
      %s20 = int_to_ptr.vmem [resolvable:$true] %s19
      %25 = dma.hbm_to_vmem [thread:$0]  %s18, 256, %s20, [#allocation5], 128, 128, 8
    $region5: #{tpu_custom_call.1} parent=1 // pred_fallthru
      _
    // Predicated region
    $region6: #{tpu_custom_call.1} parent=1 // pred_check
      _
    $region7: #{tpu_custom_call.1} parent=1 // pred_check_branch
      %27 = sbr.rel (0) target = $region9
    $region8: #{tpu_custom_call.1} parent=1 // pred_region
      %29 = vsyncadd [#allocation8], 0
      %s30 = sshll.u32 %s1, 4
      %s31 = int_to_ptr.hbm [resolvable:$true] %s30
      %s32 = sshll.u32 [#allocation7], 4
      %s33 = int_to_ptr.vmem [resolvable:$true] %s32
      %38 = dma.hbm_to_vmem [thread:$0]  %s31, 256, %s33, [#allocation8], 128, 128, 8
    $region9: #{tpu_custom_call.1} parent=1 // pred_fallthru
      _
    // Predicated region
    $region10: #{tpu_custom_call.1} parent=1 // pred_check
      _
    $region11: #{tpu_custom_call.1} parent=1 // pred_check_branch
      %40 = sbr.rel (0) target = $region13
    $region12: #{tpu_custom_call.1} parent=1 // pred_region
      %42 = dma.done [#allocation5], 256
    $region13: #{tpu_custom_call.1} parent=1 // pred_fallthru
      _
    // Predicated region
    $region14: #{tpu_custom_call.1} parent=1 // pred_check
      _
    $region15: #{tpu_custom_call.1} parent=1 // pred_check_branch
      %44 = sbr.rel (0) target = $region17
    $region16: #{tpu_custom_call.1} parent=1 // pred_region
      %46 = dma.done [#allocation8], 256
    $region17: #{tpu_custom_call.1} parent=1 // pred_fallthru
      _
    %p47 = scmp.eq.s32.totalorder 0, 0
    // Predicated region
    $region18: #{tpu_custom_call.1} parent=1 // pred_check
      %p48 = pneg %p47
    $region19: #{tpu_custom_call.1} parent=1 // pred_check_branch
      %50 = sbr.rel (%p48) target = $region21
    $region20: #{tpu_custom_call.1} parent=1 // pred_region
      %51 = vst [vmem:[#allocation2] sm:$0xff] 0.0
      %52 = vst [vmem:[#allocation3] sm:$0xff] 0
    $region21: #{tpu_custom_call.1} parent=1 // pred_fallthru
      _
    %v53 = vld [vmem:[#allocation4] sm:$0xff]
    %v54 = vld [vmem:[#allocation4 + $0x8] sm:$0xff]
    %v55 = vld [vmem:[#allocation7] sm:$0xff]
    %v56 = vld [vmem:[#allocation7 + $0x8] sm:$0xff]
    %vm57 = vcmp.ne.f32.partialorder %v55, 0.0
    %vm58 = vcmp.ne.f32.partialorder %v56, 0.0
    %v59 = vsub.f32 %v53, %v55
    %v60 = vsub.f32 %v54, %v56
    %v61 = vmul.f32 %v59, %v59
    %v62 = vmul.f32 %v60, %v60
    %v63 = vsel %vm57, %v61, 0.0
    %v64 = vsel %vm58, %v62, 0.0
    %v65 = vsel %vm57, 1, 0
    %v66 = vsel %vm58, 1, 0
    %v67 = vld [vmem:[#allocation2] sm:$0xff]
    %v68 = vadd.f32 %v63, %v64
    %v69 = vadd.f32 %v67, %v68
    %70 = vst [vmem:[#allocation2] sm:$0xff] %v69
    %v71 = vld [vmem:[#allocation3] sm:$0xff]
    %v72 = vadd.s32 %v65, %v66
    %v73 = vadd.s32 %v71, %v72
    %74 = vst [vmem:[#allocation3] sm:$0xff] %v73
    // Predicated region
    $region22: #{tpu_custom_call.1} parent=1 // pred_check
      %p75 = pneg %p47
    $region23: #{tpu_custom_call.1} parent=1 // pred_check_branch
      %77 = sbr.rel (%p75) target = $region25
    $region24: #{tpu_custom_call.1} parent=1 // pred_region
      %v78 = vld [vmem:[#allocation2] sm:$0xff]
      %79 = vadd.xlane.f32.xlu0 %v78
      %v80 = vpop.xlane.xlu0 %79
      %v81 = vrot.slane %v80, 4
      %v82 = vadd.f32 %v80, %v81
      %v83 = vrot.slane %v82, 2
      %v84 = vadd.f32 %v82, %v83
      %v85 = vrot.slane %v84, 1
      %v86 = vadd.f32 %v84, %v85
      %s87 = vtos %v86
      %s88 = scalar_lea.smem [#allocation9], 0
      %89 = sst [smem:[%s88]] %s87
      %v90 = vld [vmem:[#allocation3] sm:$0xff]
      %v91 = vand.u32 %v90, 65535
      %v92 = vshrl.u32 %v90, 16
      %v93 = vcvt.s32.f32 %v91
      %v94 = vcvt.s32.f32 %v92
      %95 = vadd.xlane.f32.xlu0 %v93
      %v96 = vpop.xlane.xlu0 %95
      %97 = vadd.xlane.f32.xlu0 %v94
      %v98 = vpop.xlane.xlu0 %97
      %v99 = vcvt.f32.s32 %v96
      %v100 = vcvt.f32.s32 %v98
      %v101 = vshll.u32 %v100, 16
      %v102 = vadd.s32 %v101, %v99
      %v103 = vrot.slane %v102, 4
      %v104 = vadd.s32 %v102, %v103
      %v105 = vrot.slane %v104, 2
      %v106 = vadd.s32 %v104, %v105
      %v107 = vrot.slane %v106, 1
      %v108 = vadd.s32 %v106, %v107
      %s109 = vtos %v108
      %s110 = scalar_lea.smem [#allocation10], 0
      %111 = sst [smem:[%s110]] %s109
    $region25: #{tpu_custom_call.1} parent=1 // pred_fallthru
      _
    // Predicated region
    $region26: #{tpu_custom_call.1} parent=1 // pred_check
      _
    $region27: #{tpu_custom_call.1} parent=1 // pred_check_branch
      %113 = sbr.rel (0) target = $region29
    $region28: #{tpu_custom_call.1} parent=1 // pred_region
      %115 = vsyncadd [#allocation6], 0
      %s117 = sshll.u32 %s2, 4
      %s118 = int_to_ptr.hbm [resolvable:$true] %s117
      %120 = dma.smem_to_hbm [#allocation9], 16, %s118, [#allocation6]
    $region29: #{tpu_custom_call.1} parent=1 // pred_fallthru
      _
    // Predicated region
    $region30: #{tpu_custom_call.1} parent=1 // pred_check
      _
    $region31: #{tpu_custom_call.1} parent=1 // pred_check_branch
      %122 = sbr.rel (0) target = $region33
    $region32: #{tpu_custom_call.1} parent=1 // pred_region
      %124 = vsyncadd [#allocation11], 0
      %s126 = sshll.u32 %s3, 4
      %s127 = int_to_ptr.hbm [resolvable:$true] %s126
      %129 = dma.smem_to_hbm [#allocation10], 16, %s127, [#allocation11]
    $region33: #{tpu_custom_call.1} parent=1 // pred_fallthru
      _
    // Predicated region
    $region34: #{tpu_custom_call.1} parent=1 // pred_check
      _
    $region35: #{tpu_custom_call.1} parent=1 // pred_check_branch
      %131 = sbr.rel (0) target = $region37
    $region36: #{tpu_custom_call.1} parent=1 // pred_region
      %133 = dma.done [#allocation6], 16
    $region37: #{tpu_custom_call.1} parent=1 // pred_fallthru
      _
    // Predicated region
    $region38: #{tpu_custom_call.1} parent=1 // pred_check
      _
    $region39: #{tpu_custom_call.1} parent=1 // pred_check_branch
      %135 = sbr.rel (0) target = $region41
    $region40: #{tpu_custom_call.1} parent=1 // pred_region
      %137 = dma.done [#allocation11], 16
    $region41: #{tpu_custom_call.1} parent=1 // pred_fallthru
      _
    %138 = sfence
    %139 = vsyncpa [#allocation5], 1
    %140 = vsyncpa [#allocation8], 1
    %141 = vsyncpa [#allocation6], 1
    %142 = vsyncpa [#allocation11], 1

</llo_original>
